<compile_context>
chip_gen: v5e
topology: v5e:2x2
jax: 0.10.0
libtpu: 0.0.40
codegen_flags: <defaults>
</compile_context>

<pallas_src>
import functools
import math

import jax
import jax.numpy as jnp
import numpy as np
from jax.experimental import pallas as pl
from jax.experimental.pallas import tpu as pltpu


def _pos_enc_kernel(eidx_ref, rep2_ref, freq_ref, phase_ref, out_ref, *, tile_n):
    """One (batch, node-tile) grid step.

    eidx_ref : (tile_n, K)    int32  neighbor indices
    rep2_ref : (2K, K*E)      f32    stacked replication matrix [256*rep ; rep]
    freq_ref : (1, K*E)       f32    frequency per lane
    phase_ref: (1, K*E)       f32    pi/2 on cos lanes, 0 on sin lanes
    out_ref  : (tile_n, K*E)  f32/bf16 flattened [cos | sin] encodings
    """
    node0 = pl.program_id(1) * tile_n

    e = eidx_ref[...].astype(jnp.float32)                                   # (tn, K)
    ii = (node0 + jax.lax.broadcasted_iota(jnp.int32, e.shape, 0)).astype(jnp.float32)
    d = e - ii                                                              # integer-valued

    # Exact hi/lo split so bf16 MXU products are exact: d = 256*d_hi + d_lo.
    d_hi = jnp.floor(d * (1.0 / 256.0))
    d_lo = d - 256.0 * d_hi
    dhl = jnp.concatenate([d_hi, d_lo], axis=1)                             # (tn, 2K)

    # Single MXU matmul replicates d across the num_embeddings lanes of each neighbor:
    #   d_rep[n, l] = 256*d_hi[n, l//E] + d_lo[n, l//E] = d[n, l//E]   (exact)
    d_rep = jnp.dot(dhl, rep2_ref[...], preferred_element_type=jnp.float32)  # (tn, K*E)

    # One transcendental per output element (sin(x + pi/2) == cos(x) on cos lanes).
    angles = d_rep * freq_ref[...] + phase_ref[...]
    out_ref[...] = jnp.sin(angles).astype(out_ref.dtype)


def _choose_tile_n(n_nodes, batch, row_bytes, target_bytes):
    """Fixed good tile: ~target_bytes output blocks, multiple of 8 rows, >=8 grid steps."""
    n_pad8 = -(-n_nodes // 8) * 8
    tile = max(8, (target_bytes // max(row_bytes, 1)) // 8 * 8)
    tile = min(tile, n_pad8)
    # Keep enough grid steps for megacore sharding (v7x: 2 TCs) and pipelining.
    while tile > 8 and batch * (-(-n_nodes // tile)) < 8:
        tile = max(8, (tile // 2) // 8 * 8)
    return tile


def positional_encodings(E_idx, num_embeddings, *,
                         target_block_bytes=2 << 20, out_dtype=jnp.float32):
    """E_idx: (B, N, K) int array -> (B, N, K, num_embeddings) encodings."""
    assert num_embeddings % 2 == 0
    E_idx = jnp.asarray(E_idx, dtype=jnp.int32)
    B, N, K = E_idx.shape
    # hi/lo bf16 split is exact only while |d_hi| <= 256, i.e. |E_idx - node| < 65536.
    assert N <= 65536, "N too large for the exact bf16 hi/lo replication split"
    half = num_embeddings // 2
    KE = K * num_embeddings

    # --- tiny constant tables (computed once in numpy, passed to every grid step) -----
    lane = np.arange(KE)
    k_of_lane = lane // num_embeddings            # which neighbor this lane belongs to
    e_of_lane = lane % num_embeddings             # channel within the neighbor block
    base_freq = np.exp(np.arange(0, num_embeddings, 2, dtype=np.float32)
                       * -(math.log(10000.0) / num_embeddings))              # (half,)
    freq_row = base_freq[np.where(e_of_lane < half, e_of_lane, e_of_lane - half)]
    freq_row = jnp.asarray(freq_row.reshape(1, KE).astype(np.float32))       # (1, KE)
    phase_row = jnp.asarray(
        np.where(e_of_lane < half, np.float32(np.pi / 2.0), np.float32(0.0))
        .reshape(1, KE).astype(np.float32))                                  # (1, KE)
    rep = (k_of_lane[None, :] == np.arange(K)[:, None]).astype(np.float32)   # (K, KE)
    rep2 = jnp.asarray(np.concatenate([256.0 * rep, rep], axis=0))           # (2K, KE)

    # --- tiling (cdiv grid + explicit padding; no divisor-of-N pathologies) -----------
    out_itemsize = jnp.dtype(out_dtype).itemsize
    row_bytes = KE * out_itemsize
    tile_n = _choose_tile_n(N, B, row_bytes, target_block_bytes)
    n_blocks = -(-N // tile_n)
    N_pad = n_blocks * tile_n
    E_in = E_idx if N_pad == N else jnp.pad(E_idx, ((0, 0), (0, N_pad - N), (0, 0)))
    grid = (B, n_blocks)

    # --- explicit VMEM budget: 2x out block (double buffer) + 2x lane-padded input
    # block + constants + ~4 blocks of f32 intermediates + slack.  Clamped below v7x's
    # 64 MiB physical per-TC VMEM.
    out_block = tile_n * KE * out_itemsize
    in_block = tile_n * max(K, 128) * 4
    const_bytes = (2 * K + 2) * max(KE, 128) * 4
    budget = 2 * out_block + 2 * in_block + 2 * const_bytes + 4 * tile_n * KE * 4 + (1 << 20)
    vmem_limit = int(min(max(budget, 32 << 20), 48 << 20))

    kernel = functools.partial(_pos_enc_kernel, tile_n=tile_n)
    cost = pl.CostEstimate(
        flops=int(B * N_pad * (2 * (2 * K) * KE + 3 * KE)),
        transcendentals=int(B * N_pad * KE),
        bytes_accessed=int(B * N_pad * K * 4 + B * N_pad * KE * out_itemsize),
    )

    flat = pl.pallas_call(
        kernel,
        out_shape=jax.ShapeDtypeStruct((B, N_pad, KE), out_dtype),
        grid_spec=pltpu.PrefetchScalarGridSpec(
            num_scalar_prefetch=0,
            grid=grid,
            in_specs=[
                pl.BlockSpec((None, tile_n, K), lambda b, n: (b, n, 0)),   # E_idx tile
                pl.BlockSpec((2 * K, KE), lambda b, n: (0, 0)),            # stacked rep
                pl.BlockSpec((1, KE), lambda b, n: (0, 0)),                # frequency row
                pl.BlockSpec((1, KE), lambda b, n: (0, 0)),                # phase row
            ],
            out_specs=pl.BlockSpec((None, tile_n, KE), lambda b, n: (b, n, 0)),
        ),
        compiler_params=pltpu.CompilerParams(
            dimension_semantics=("parallel", "parallel"),
            vmem_limit_bytes=vmem_limit),
        cost_estimate=cost,
    )(E_in, rep2, freq_row, phase_row)

    out = flat.reshape(B, N_pad, K, num_embeddings)   # free contiguous un-collapse
    if N_pad != N:
        out = out[:, :N]
    return out


def positional_encodings_ref(E_idx, num_embeddings):
    """Pure-JAX reference matching the PyTorch forward exactly."""
    B, N, K = E_idx.shape
    ii = jnp.arange(N, dtype=jnp.float32).reshape(1, -1, 1)
    d = (E_idx.astype(jnp.float32) - ii)[..., None]
    frequency = jnp.exp(
        jnp.arange(0, num_embeddings, 2, dtype=jnp.float32)
        * -(math.log(10000.0) / num_embeddings))
    angles = d * frequency.reshape(1, 1, 1, -1)
    return jnp.concatenate([jnp.cos(angles), jnp.sin(angles)], axis=-1)


if __name__ == "__main__":
    key = jax.random.PRNGKey(0)

    # Case 1: aligned shapes (batch=2, nodes=16, neighbors=8, num_embeddings=16)
    B, N, K = 2, 16, 8
    num_embeddings = 16
    E_idx = jax.random.randint(key, (B, N, K), 0, N, dtype=jnp.int32)
    out = jax.block_until_ready(positional_encodings(E_idx, num_embeddings))
    ref = positional_encodings_ref(E_idx, num_embeddings)
    assert out.shape == (B, N, K, num_embeddings) and out.dtype == jnp.float32
    assert jnp.allclose(out, ref, atol=2e-5, rtol=1e-5), "mismatch vs reference (aligned)"

    # Case 2: awkward node count (exercises the cdiv grid + padding path)
    N2 = 13
    E_idx2 = jax.random.randint(jax.random.PRNGKey(1), (B, N2, K), 0, N2, dtype=jnp.int32)
    out2 = jax.block_until_ready(positional_encodings(E_idx2, num_embeddings))
    ref2 = positional_encodings_ref(E_idx2, num_embeddings)
    assert out2.shape == (B, N2, K, num_embeddings)
    assert jnp.allclose(out2, ref2, atol=2e-5, rtol=1e-5), "mismatch vs reference (padded)"

    print("KERNEL_OK")
</pallas_src>

<mosaic_0001>
module attributes {stable_mosaic.version = 11 : i64} {
  func.func @_pos_enc_kernel(%arg0: i32, %arg1: i32, %arg2: memref<1x8x8xi32, #tpu.memory_space<vmem>>, %arg3: memref<16x128xf32, #tpu.memory_space<vmem>>, %arg4: memref<1x128xf32, #tpu.memory_space<vmem>>, %arg5: memref<1x128xf32, #tpu.memory_space<vmem>>, %arg6: memref<1x8x128xf32, #tpu.memory_space<vmem>>) attributes {dimension_semantics = [#tpu.dimension_semantics<parallel>, #tpu.dimension_semantics<parallel>], iteration_bounds = array<i64: 2, 2>, scalar_prefetch = 0 : i64, scratch_operands = 0 : i64, tpu.core_type = #tpu.core_type<tc>, window_params = [{transform_indices = @transform_0, window_bounds = array<i64: 1, 8, 8>}, {pipeline_mode = #tpu.pipeline_mode<synchronous>, transform_indices = @transform_1, window_bounds = array<i64: 16, 128>}, {pipeline_mode = #tpu.pipeline_mode<synchronous>, transform_indices = @transform_2, window_bounds = array<i64: 1, 128>}, {pipeline_mode = #tpu.pipeline_mode<synchronous>, transform_indices = @transform_3, window_bounds = array<i64: 1, 128>}, {transform_indices = @transform_4, window_bounds = array<i64: 1, 8, 128>}]} {
    %c8_i32 = arith.constant 8 : i32
    %0 = arith.muli %arg1, %c8_i32 : i32
    %c0 = arith.constant 0 : index
    %c0_0 = arith.constant 0 : index
    %c0_1 = arith.constant 0 : index
    %1 = vector.load %arg2[%c0, %c0_0, %c0_1] : memref<1x8x8xi32, #tpu.memory_space<vmem>>, vector<1x8x8xi32>
    %2 = vector.shape_cast %1 : vector<1x8x8xi32> to vector<8x8xi32>
    %3 = arith.sitofp %2 : vector<8x8xi32> to vector<8x8xf32>
    %4 = tpu.iota {dimensions = array<i32: 0>} : vector<8x8xi32>
    %5 = vector.broadcast %0 : i32 to vector<8x8xi32>
    %6 = arith.addi %5, %4 : vector<8x8xi32>
    %7 = arith.sitofp %6 : vector<8x8xi32> to vector<8x8xf32>
    %8 = arith.subf %3, %7 : vector<8x8xf32>
    %cst = arith.constant 3.906250e-03 : f32
    %9 = vector.broadcast %cst : f32 to vector<8x8xf32>
    %10 = arith.mulf %8, %9 : vector<8x8xf32>
    %11 = math.floor %10 : vector<8x8xf32>
    %cst_2 = arith.constant 2.560000e+02 : f32
    %12 = vector.broadcast %cst_2 : f32 to vector<8x8xf32>
    %13 = arith.mulf %12, %11 : vector<8x8xf32>
    %14 = arith.subf %8, %13 : vector<8x8xf32>
    %15 = tpu.concatenate %11, %14 in 1 : vector<8x8xf32>, vector<8x8xf32> -> vector<8x16xf32>
    %c0_3 = arith.constant 0 : index
    %c0_4 = arith.constant 0 : index
    %16 = vector.load %arg3[%c0_3, %c0_4] : memref<16x128xf32, #tpu.memory_space<vmem>>, vector<16x128xf32>
    %cst_5 = arith.constant dense<0.000000e+00> : vector<8x128xf32>
    %17 = tpu.matmul %15, %16, %cst_5 {dimension_numbers = #tpu.dot_dimension_numbers<[1], [0], [0], [1], [0, 0, 1, 1], [], []>} : vector<8x16xf32>, vector<16x128xf32>, vector<8x128xf32> -> vector<8x128xf32>
    %c0_6 = arith.constant 0 : index
    %c0_7 = arith.constant 0 : index
    %18 = vector.load %arg4[%c0_6, %c0_7] : memref<1x128xf32, #tpu.memory_space<vmem>>, vector<1x128xf32>
    %19 = vector.broadcast %18 : vector<1x128xf32> to vector<8x128xf32>
    %20 = arith.mulf %17, %19 : vector<8x128xf32>
    %c0_8 = arith.constant 0 : index
    %c0_9 = arith.constant 0 : index
    %21 = vector.load %arg5[%c0_8, %c0_9] : memref<1x128xf32, #tpu.memory_space<vmem>>, vector<1x128xf32>
    %22 = vector.broadcast %21 : vector<1x128xf32> to vector<8x128xf32>
    %23 = arith.addf %20, %22 : vector<8x128xf32>
    %24 = math.sin %23 : vector<8x128xf32>
    %c0_10 = arith.constant 0 : index
    %c0_11 = arith.constant 0 : index
    %c0_12 = arith.constant 0 : index
    %25 = vector.load %arg6[%c0_10, %c0_11, %c0_12] : memref<1x8x128xf32, #tpu.memory_space<vmem>>, vector<1x8x128xf32>
    %26 = vector.shape_cast %25 : vector<1x8x128xf32> to vector<8x128xf32>
    %27 = vector.shape_cast %24 : vector<8x128xf32> to vector<1x8x128xf32>
    tpu.vector_store %arg6[%c0_10, %c0_11, %c0_12], %27 {strides = array<i32>} : memref<1x8x128xf32, #tpu.memory_space<vmem>>, vector<1x8x128xf32>,
    return
  }
  func.func @transform_0(%arg0: i32, %arg1: i32) -> (i32, i32, i32) {
    %c0_i32 = arith.constant 0 : i32
    %c0_i32_0 = arith.constant 0 : i32
    return %arg0, %arg1, %c0_i32 : i32, i32, i32
  }
  func.func @transform_1(%arg0: i32, %arg1: i32) -> (i32, i32) {
    %c0_i32 = arith.constant 0 : i32
    %c0_i32_0 = arith.constant 0 : i32
    %c0_i32_1 = arith.constant 0 : i32
    return %c0_i32, %c0_i32_0 : i32, i32
  }
  func.func @transform_2(%arg0: i32, %arg1: i32) -> (i32, i32) {
    %c0_i32 = arith.constant 0 : i32
    %c0_i32_0 = arith.constant 0 : i32
    %c0_i32_1 = arith.constant 0 : i32
    return %c0_i32, %c0_i32_0 : i32, i32
  }
  func.func @transform_3(%arg0: i32, %arg1: i32) -> (i32, i32) {
    %c0_i32 = arith.constant 0 : i32
    %c0_i32_0 = arith.constant 0 : i32
    %c0_i32_1 = arith.constant 0 : i32
    return %c0_i32, %c0_i32_0 : i32, i32
  }
  func.func @transform_4(%arg0: i32, %arg1: i32) -> (i32, i32, i32) {
    %c0_i32 = arith.constant 0 : i32
    %c0_i32_0 = arith.constant 0 : i32
    return %arg0, %arg1, %c0_i32 : i32, i32, i32
  }
}

</mosaic_0001>

<llo_original>
// kernel: tpu_custom_call.1
$region0: #{tpu_custom_call.1}
  #allocation0 [shape = 'u32[]', space=smem, size = 0x4, offset = 0x4, fixed_abs, tag = 'smem constant byte address 0x4 - core index']
  #allocation1 [shape = 'u32[72,128]{1,0:T(1,128)}', space=vmem, size = 0x9000, scoped, tag = 'internal scratch']
  %s0 = inlined_call_operand.vmem [shape: s32[2,16,8], index: 0, kind: input, shape index: {}]
  %s1 = inlined_call_operand.vmem [shape: f32[16,128], index: 1, kind: input, shape index: {}]
  %s2 = inlined_call_operand.vmem [shape: f32[1,128], index: 2, kind: input, shape index: {}]
  %s3 = inlined_call_operand.vmem [shape: f32[1,128], index: 3, kind: input, shape index: {}]
  %s4 = inlined_call_operand.hbm [shape: f32[2,16,128], index: 4, kind: output, shape index: {}]
  %s5 = sld [smem:[#allocation0]]
  $region49: #{tpu_custom_call.1} parent=0
    _
  %s7 = ssub.s32 1, %s5
  %s8 = scalar_select 0, %s7, %s5
  $region1: #{tpu_custom_call.1} parent=0
    #allocation2 [shape = 'u8[8192]{0}', space=vmem, size = 0x2000, scoped, tag = 'output window, operand 0']
    #allocation3 [shape = 's32[2]{0}', space=sflag, size = 0x8, scoped, tag = 'scoped memory for tpu_custom_call.1']
    %9 = vsyncpa [#allocation3], 0
    %s10 = scalar_lea.sflag [#allocation3], 1
    %11 = vsyncpa %s10, 0
    loop: start=0, step=1, limit=6
    $region2: #{tpu_custom_call.1} parent=1 // loop_pre_header
      _
    $region3: #{tpu_custom_call.1} parent=1 // loop_header
      %s13 = sphi 0, %s17
      %p14 = scmp.ge.s32.totalorder %s13, 6
      %s20 = sphi 0, %s32
      %s21 = sphi 0, %s28
      %s22 = sphi 0, %s20
      %s23 = sphi 0, %s21
      %s24 = sphi 0, %s22
      %s25 = sphi 0, %s23
      %s37 = sphi 0, %s39
      %s40 = sphi 0, %s37
      %s41 = sphi 0, %s40
      %s57 = sphi 0, %s41
      %s61 = sphi 0, %s61
      %s63 = sphi 0, %s61
      %s64 = sphi 0, %s63
      %s78 = sphi 0, %s64
      %s82 = sphi 0, %s82
      %s84 = sphi 0, %s82
      %s85 = sphi 0, %s84
      %s99 = sphi 0, %s85
      %s103 = sphi 0, %s103
      %s105 = sphi 0, %s103
      %s106 = sphi 0, %s105
      %s120 = sphi 0, %s106
      %s128 = sphi 0, %s130
      %s131 = sphi 0, %s128
      %s132 = sphi 0, %s131
      %s148 = sphi 0, %s132
    $region4: #{tpu_custom_call.1} parent=1 // loop_header_branch
      %16 = sbr.rel (%p14) target = $region8
    $region5: #{tpu_custom_call.1} parent=1 // loop_body
      %s18 = ssub.s32 %s13, 1
      %s19 = ssub.s32 %s13, 2
      %s26 = sadd.s32 1, %s21
      %p27 = scmp.ge.s32.totalorder %s26, 2
      %s28 = scalar_select %p27, 0, %s26
      %s29 = sadd.s32 1, %s20
      %s30 = scalar_select %p27, %s29, %s20
      %p31 = scmp.ge.s32.totalorder %s30, 2
      %s32 = scalar_select %p31, 0, %s30
      %s33 = ssub.s32 %s20, %s32
      %s34 = ssub.s32 %s21, %s28
      %s35 = sor.u32 %s33, %s34
      %p36 = scmp.eq.s32.totalorder %s35, 0
      %s38 = sadd.s32 %s37, 1
      %s39 = scalar_select %p36, %s37, %s38
      %p42 = pneg %p36
      %p43 = scmp.eq.s32.totalorder %s13, 3
      %p44 = por %p42, %p43
      %p45 = scmp.ne.s32.totalorder %s37, %s40
      %p46 = scmp.eq.s32.totalorder %s13, 0
      %p47 = por %p45, %p46
      %p48 = scmp.ne.s32.totalorder %s37, %s40
      %p49 = scmp.eq.s32.totalorder %s18, 3
      %p50 = por %p48, %p49
      %p51 = scmp.ne.s32.totalorder %s40, %s41
      %p52 = scmp.eq.s32.totalorder %s18, 0
      %p53 = por %p51, %p52
      %p54 = scmp.ne.s32.totalorder %s40, %s41
      %p55 = scmp.eq.s32.totalorder %s19, 3
      %p56 = por %p54, %p55
      %p58 = scmp.ne.s32.totalorder %s41, %s57
      %p59 = scmp.eq.s32.totalorder %s19, 0
      %p60 = por %p58, %p59
      %s62 = sadd.s32 %s61, 1
      %p65 = scmp.eq.s32.totalorder %s13, 3
      %p66 = scmp.ne.s32.totalorder %s61, %s63
      %p67 = scmp.eq.s32.totalorder %s13, 0
      %p68 = por %p66, %p67
      %p69 = scmp.ne.s32.totalorder %s61, %s63
      %p70 = scmp.eq.s32.totalorder %s18, 3
      %p71 = por %p69, %p70
      %p72 = scmp.ne.s32.totalorder %s63, %s64
      %p73 = scmp.eq.s32.totalorder %s18, 0
      %p74 = por %p72, %p73
      %p75 = scmp.ne.s32.totalorder %s63, %s64
      %p76 = scmp.eq.s32.totalorder %s19, 3
      %p77 = por %p75, %p76
      %p79 = scmp.ne.s32.totalorder %s64, %s78
      %p80 = scmp.eq.s32.totalorder %s19, 0
      %p81 = por %p79, %p80
      %s83 = sadd.s32 %s82, 1
      %p86 = scmp.eq.s32.totalorder %s13, 3
      %p87 = scmp.ne.s32.totalorder %s82, %s84
      %p88 = scmp.eq.s32.totalorder %s13, 0
      %p89 = por %p87, %p88
      %p90 = scmp.ne.s32.totalorder %s82, %s84
      %p91 = scmp.eq.s32.totalorder %s18, 3
      %p92 = por %p90, %p91
      %p93 = scmp.ne.s32.totalorder %s84, %s85
      %p94 = scmp.eq.s32.totalorder %s18, 0
      %p95 = por %p93, %p94
      %p96 = scmp.ne.s32.totalorder %s84, %s85
      %p97 = scmp.eq.s32.totalorder %s19, 3
      %p98 = por %p96, %p97
      %p100 = scmp.ne.s32.totalorder %s85, %s99
      %p101 = scmp.eq.s32.totalorder %s19, 0
      %p102 = por %p100, %p101
      %s104 = sadd.s32 %s103, 1
      %p107 = scmp.eq.s32.totalorder %s13, 3
      %p108 = scmp.ne.s32.totalorder %s103, %s105
      %p109 = scmp.eq.s32.totalorder %s13, 0
      %p110 = por %p108, %p109
      %p111 = scmp.ne.s32.totalorder %s103, %s105
      %p112 = scmp.eq.s32.totalorder %s18, 3
      %p113 = por %p111, %p112
      %p114 = scmp.ne.s32.totalorder %s105, %s106
      %p115 = scmp.eq.s32.totalorder %s18, 0
      %p116 = por %p114, %p115
      %p117 = scmp.ne.s32.totalorder %s105, %s106
      %p118 = scmp.eq.s32.totalorder %s19, 3
      %p119 = por %p117, %p118
      %p121 = scmp.ne.s32.totalorder %s106, %s120
      %p122 = scmp.eq.s32.totalorder %s19, 0
      %p123 = por %p121, %p122
      %s124 = ssub.s32 %s20, %s32
      %s125 = ssub.s32 %s21, %s28
      %s126 = sor.u32 %s124, %s125
      %p127 = scmp.eq.s32.totalorder %s126, 0
      %s129 = sadd.s32 %s128, 1
      %s130 = scalar_select %p127, %s128, %s129
      %p133 = pneg %p127
      %p134 = scmp.eq.s32.totalorder %s13, 3
      %p135 = por %p133, %p134
      %p136 = scmp.ne.s32.totalorder %s128, %s131
      %p137 = scmp.eq.s32.totalorder %s13, 0
      %p138 = por %p136, %p137
      %p139 = scmp.ne.s32.totalorder %s128, %s131
      %p140 = scmp.eq.s32.totalorder %s18, 3
      %p141 = por %p139, %p140
      %p142 = scmp.ne.s32.totalorder %s131, %s132
      %p143 = scmp.eq.s32.totalorder %s18, 0
      %p144 = por %p142, %p143
      %p145 = scmp.ne.s32.totalorder %s131, %s132
      %p146 = scmp.eq.s32.totalorder %s19, 3
      %p147 = por %p145, %p146
      %p149 = scmp.ne.s32.totalorder %s132, %s148
      %p150 = scmp.eq.s32.totalorder %s19, 0
      %p151 = por %p149, %p150
      %p152 = scmp.le.s32.totalorder 1, %s13
      %p153 = scmp.lt.s32.totalorder %s13, 5
      %p154 = pnand %p152, %p153
      %p155 = pneg %p154
      // Predicated region
      $region9: #{tpu_custom_call.1} parent=5 // pred_check
        _
      $region10: #{tpu_custom_call.1} parent=5 // pred_check_branch
        %157 = sbr.rel (%p154) target = $region12
      $region11: #{tpu_custom_call.1} parent=5 // pred_region
        %s158 = ssub.s32 %s13, 1
        // Predicated region
        $region13: #{tpu_custom_call.1} parent=11 // pred_check
          %p159 = pneg %p74
        $region14: #{tpu_custom_call.1} parent=11 // pred_check_branch
          %161 = sbr.rel (%p159) target = $region16
        $region15: #{tpu_custom_call.1} parent=11 // pred_region
          _
        $region16: #{tpu_custom_call.1} parent=11 // pred_fallthru
          _
        // Predicated region
        $region17: #{tpu_custom_call.1} parent=11 // pred_check
          %p162 = pneg %p95
        $region18: #{tpu_custom_call.1} parent=11 // pred_check_branch
          %164 = sbr.rel (%p162) target = $region20
        $region19: #{tpu_custom_call.1} parent=11 // pred_region
          _
        $region20: #{tpu_custom_call.1} parent=11 // pred_fallthru
          _
        // Predicated region
        $region21: #{tpu_custom_call.1} parent=11 // pred_check
          %p165 = pneg %p116
        $region22: #{tpu_custom_call.1} parent=11 // pred_check_branch
          %167 = sbr.rel (%p165) target = $region24
        $region23: #{tpu_custom_call.1} parent=11 // pred_region
          _
        $region24: #{tpu_custom_call.1} parent=11 // pred_fallthru
          _
      $region12: #{tpu_custom_call.1} parent=5 // pred_fallthru
        _
      %p168 = scmp.lt.s32.totalorder %s13, 4
      // Predicated region
      $region25: #{tpu_custom_call.1} parent=5 // pred_check
        %p169 = pneg %p168
      $region26: #{tpu_custom_call.1} parent=5 // pred_check_branch
        %171 = sbr.rel (%p169) target = $region28
      $region27: #{tpu_custom_call.1} parent=5 // pred_region
        // Predicated region
        $region29: #{tpu_custom_call.1} parent=27 // pred_check
          %p172 = pneg %p47
        $region30: #{tpu_custom_call.1} parent=27 // pred_check_branch
          %174 = sbr.rel (%p172) target = $region32
        $region31: #{tpu_custom_call.1} parent=27 // pred_region
          %p175 = scmp.lt.s32.totalorder %s20, 1
          %s176 = scalar_select %p175, %s20, 1
          %p177 = scmp.lt.s32.totalorder %s21, 1
          %s178 = scalar_select %p177, %s21, 1
          %s179 = smul.addr %s176, 2
          %s180 = sadd.s32 %s178, %s179
          %s181 = smul.addr %s180, 8
          %s182 = scalar_lea.vmem %s0, %s181
        $region32: #{tpu_custom_call.1} parent=27 // pred_fallthru
          _
      $region28: #{tpu_custom_call.1} parent=5 // pred_fallthru
        _
      %p183 = scmp.le.s32.totalorder 1, %s13
      %p184 = scmp.lt.s32.totalorder %s13, 5
      %p185 = pnand %p183, %p184
      %p186 = pneg %p185
      // Predicated region
      $region33: #{tpu_custom_call.1} parent=5 // pred_check
        _
      $region34: #{tpu_custom_call.1} parent=5 // pred_check_branch
        %188 = sbr.rel (%p185) target = $region36
      $region35: #{tpu_custom_call.1} parent=5 // pred_region
        %s189 = ssub.s32 %s13, 1
        %p190 = scmp.lt.s32.totalorder %s22, 1
        %s191 = scalar_select %p190, %s22, 1
        %p192 = scmp.lt.s32.totalorder %s23, 1
        %s193 = scalar_select %p192, %s23, 1
        %s194 = smul.addr %s191, 2
        %s195 = sadd.s32 %s193, %s194
        %s196 = smul.addr %s195, 8
        %s197 = scalar_lea.vmem %s0, %s196
        %p198 = pneg %p53
        %p199 = pneg %p50
        %p200 = pneg %p74
        %p201 = pneg %p71
        %p202 = pneg %p95
        %p203 = pneg %p92
        %p204 = pneg %p116
        %p205 = pneg %p113
        %p206 = pneg %p144
        %p207 = pneg %p141
        %s208 = sand.u32 %s131, 1
        %s209 = scalar_lea.sflag [#allocation3], %s208
        %s210 = sand.u32 %s131, 1
        %s211 = smul.addr %s210, 8
        %s212 = scalar_lea.vmem [#allocation2], %s211
        %p213 = scmp.lt.s32.totalorder %s22, 1
        %s214 = scalar_select %p213, %s22, 1
        %p215 = scmp.lt.s32.totalorder %s23, 1
        %s216 = scalar_select %p215, %s23, 1
        %s217 = smul.addr %s214, 2
        %s218 = sadd.s32 %s216, %s217
        %s219 = smul.addr %s218, 8
        %s220 = scalar_lea.vmem %s0, %s219
        %s221 = smul.u32 %s23, 8
        %v222 = vld [vmem:[%s220] sm:$0xff]
        %v223 = vcvt.s32.f32 %v222
        %v224 = vlaneseq
        %v225 = vshrl.u32 %v224, 7
        %v226 = vstv %s221
        %v227 = vadd.s32 %v226, %v225
        %v228 = vcvt.s32.f32 %v227
        %v229 = vsub.f32 %v223, %v228
        %v230 = vmul.f32 %v229, 0.00390625
        %v231 = vfloor.f32 %v230
        %v232 = vmul.f32 %v231, 256.0
        %v233 = vsub.f32 %v229, %v232
        %235 = vrot.lane.b32.xlu0 %v233, 8
        %v236 = vpop.permute.xlu0 %235
        %vm238 = vcmask 64512
        %v239 = vsel %vm238, %v231, %v236
        %v240 = vld [vmem:[%s1] sm:$0xff]
        %v241 = vld [vmem:[%s1 + $0x8] sm:$0xff]
        %vm242 = vcmask 130048
        %v244 = vsel %vm242, %v239, 0
        %246 = vmatpush.msra.mxu0 0.0
        %247 = vmatpush.msra.mxu0 0.0
        %248 = vmatpush.msra.mxu0 0.0
        %249 = vmatpush.msra.mxu0 0.0
        %250 = vmatpush.msra.mxu0 0.0
        %251 = vmatpush.msra.mxu0 0.0
        %252 = vmatpush.msra.mxu0 0.0
        %253 = vmatpush.msra.mxu0 0.0
        %254 = vmatpush.msra.mxu0 0.0
        %255 = vmatpush.msra.mxu0 0.0
        %256 = vmatpush.msra.mxu0 0.0
        %257 = vmatpush.msra.mxu0 0.0
        %258 = vmatpush.msra.mxu0 0.0
        %259 = vmatpush.msra.mxu0 0.0
        %260 = vmatpush.msra.mxu0 %v241
        %261 = vmatpush.msra.mxu0 %v240
        %262 = vmatmul.f32.gmra.mxu0 %v244
        %v263 = vpop.f32.mrf.mxu0
        %v264 = vadd.f32 0.0, %v263
        %265 = vdwg.mxu0
        %v266 = vld [vmem:[%s2] sm:$0x1]
        %v268 = vperm.slane %v266, 0
        %v270 = vmul.f32 %v264, %v268
        %v271 = vld [vmem:[%s3] sm:$0x1]
        %v273 = vperm.slane %v271, 0
        %v275 = vadd.f32 %v270, %v273
        %v276 = vand.u32 2147483647, %v275
        %vm277 = vcmp.le.f32.partialorder %v276, 0.7853982
        %vm278 = vcmp.lt.s32.totalorder %v275, 0
        %v279 = vand.u32 %v275, 2139095040
        %v280 = vshrl.u32 %v279, 23
        %v281 = vsub.s32 %v280, 127
        %v282 = vand.u32 2147483647, %v275
        %v283 = vand.u32 %v282, 8388607
        %v284 = vor.u32 %v283, 8388608
        %v285 = vsub.s32 0, %v284
        %v286 = vadd.s32 %v281, 1
        %vm287 = vcmp.gt.s32.totalorder %v286, 0
        %v288 = vsel %vm287, %v286, 0
        %v289 = vshrl.u32 %v288, 5
        %v290 = vand.u32 %v288, 31
        %v291 = vsub.s32 32, %v290
        %v292 = vshrl.u32 683565275, %v291
        %v293 = vshll.u32 683565275, %v290
        %v294 = vshrl.u32 2475754826, %v291
        %v295 = vor.u32 %v293, %v294
        %v296 = vshll.u32 2475754826, %v290
        %v297 = vshrl.u32 2131351028, %v291
        %v298 = vor.u32 %v296, %v297
        %v299 = vshll.u32 2131351028, %v290
        %v300 = vshrl.u32 2102212464, %v291
        %v301 = vor.u32 %v299, %v300
        %v302 = vshll.u32 2102212464, %v290
        %v303 = vshrl.u32 920167782, %v291
        %v304 = vor.u32 %v302, %v303
        %v305 = vshll.u32 920167782, %v290
        %v306 = vshrl.u32 1326507024, %v291
        %v307 = vor.u32 %v305, %v306
        %vm308 = vcmp.lt.s32.totalorder %v289, 1
        %vm309 = vcmp.lt.s32.totalorder %v289, 2
        %vm310 = vcmp.lt.s32.totalorder %v289, 3
        %vm311 = vcmp.lt.s32.totalorder %v289, 4
        %v312 = vsel %vm308, %v292, %v295
        %v313 = vsel %vm311, %v301, 2102212464
        %v314 = vsel %vm310, %v298, %v313
        %v315 = vsel %vm309, %v312, %v314
        %v316 = vsel %vm308, %v295, %v298
        %v317 = vsel %vm311, %v304, 920167782
        %v318 = vsel %vm310, %v301, %v317
        %v319 = vsel %vm309, %v316, %v318
        %v320 = vsel %vm308, %v298, %v301
        %v321 = vsel %vm311, %v307, 1326507024
        %v322 = vsel %vm310, %v304, %v321
        %v323 = vsel %vm309, %v320, %v322
        %v324 = vshll.u32 %v284, 8
        %v325 = vand.u32 %v324, 65535
        %v326 = vshrl.u32 %v324, 16
        %v327 = vand.u32 %v323, 65535
        %v328 = vshrl.u32 %v323, 16
        %v329 = vmul.u32 %v325, %v327
        %v330 = vmul.u32 %v325, %v328
        %v331 = vmul.u32 %v326, %v327
        %v332 = vmul.u32 %v326, %v328
        %v333 = vshll.u32 %v330, 16
        %v334 = vshrl.u32 %v330, 16
        %v335 = vshll.u32 %v331, 16
        %v336 = vshrl.u32 %v331, 16
        %vm337 = vc.u32 %v329, %v333
        %v338 = vsel %vm337, 1, 0
        %v339 = vadd.s32 %v329, %v333
        %v340 = vadd.s32 %v332, %v338
        %vm341 = vc.u32 %v339, %v335
        %v342 = vsel %vm341, 1, 0
        %v343 = vadd.s32 %v339, %v335
        %v344 = vadd.s32 %v340, %v342
        %v345 = vadd.s32 %v344, %v334
        %v346 = vadd.s32 %v345, %v336
        %v347 = vand.u32 %v324, 65535
        %v348 = vshrl.u32 %v324, 16
        %v349 = vand.u32 %v319, 65535
        %v350 = vshrl.u32 %v319, 16
        %v351 = vmul.u32 %v347, %v349
        %v352 = vmul.u32 %v347, %v350
        %v353 = vmul.u32 %v348, %v349
        %v354 = vmul.u32 %v348, %v350
        %v355 = vshll.u32 %v352, 16
        %v356 = vshrl.u32 %v352, 16
        %v357 = vshll.u32 %v353, 16
        %v358 = vshrl.u32 %v353, 16
        %vm359 = vc.u32 %v351, %v355
        %v360 = vsel %vm359, 1, 0
        %v361 = vadd.s32 %v351, %v355
        %v362 = vadd.s32 %v354, %v360
        %vm363 = vc.u32 %v361, %v357
        %v364 = vsel %vm363, 1, 0
        %v365 = vadd.s32 %v361, %v357
        %v366 = vadd.s32 %v362, %v364
        %v367 = vadd.s32 %v366, %v356
        %v368 = vadd.s32 %v367, %v358
        %v369 = vmul.u32 %v324, %v315
        %v370 = vadd.s32 %v346, %v365
        %vm371 = vc.u32 %v346, %v365
        %v372 = vadd.s32 %v368, 1
        %v373 = vsel %vm371, %v372, %v368
        %v374 = vadd.s32 %v369, %v373
        %v375 = vadd.s32 %v374, 536870912
        %v376 = vshrl.u32 %v375, 30
        %v377 = vshll.u32 %v376, 30
        %v378 = vsub.s32 %v374, %v377
        %vm379 = vcmp.lt.s32.totalorder %v378, 0
        %v380 = vsub.s32 0, %v378
        %v381 = vsel %vm379, %v380, %v378
        %v382 = vclz %v381
        %v383 = vsub.s32 %v382, 2
        %vm384 = vcmp.gt.s32.totalorder 0, %v383
        %v385 = vsel %vm384, 0, %v383
        %v386 = vsub.s32 32, %v385
        %v387 = vshll.u32 %v378, %v385
        %v388 = vshrl.u32 %v370, %v386
        %v389 = vor.u32 %v387, %v388
        %v390 = vsub.s32 4294967266, %v385
        %v391 = vadd.s32 %v390, 127
        %v392 = vshll.u32 %v391, 23
        %v393 = vor.u32 4788187, %v392
        %v394 = vand.u32 2147483647, %v393
        %v396 = vcvt.s32.f32 %v389
        %v397 = vmul.f32 %v396, %v394
        %v398 = vxor.u32 %v397, 2147483648
        %v399 = vsel %vm278, %v398, %v397
        %v400 = vsub.s32 4, %v376
        %v401 = vsel %vm278, %v400, %v376
        %v402 = vsel %vm277, %v275, %v399
        %v403 = vsel %vm277, 0, %v401
        %v404 = vmul.f32 %v402, %v402
        %v405 = vmul.f32 %v404, -0.001358992
        %v406 = vadd.f32 %v405, 0.041655596
        %v407 = vmul.f32 %v404, %v406
        %v408 = vadd.f32 %v407, -0.4999988
        %v409 = vmul.f32 %v404, %v408
        %v410 = vadd.f32 1.0, %v409
        %v411 = vmul.f32 %v402, %v402
        %v412 = vmul.f32 %v411, -0.00019511016
        %v413 = vadd.f32 %v412, 0.008332121
        %v414 = vmul.f32 %v411, %v413
        %v415 = vadd.f32 %v414, -0.16666654
        %v416 = vmul.f32 %v411, %v415
        %v417 = vadd.f32 %v416, 1.0
        %v418 = vmul.f32 %v417, %v402
        %vm419 = vweird.f32 %v275
        %v420 = vadd.s32 %v403, 3
        %v421 = vand.u32 %v420, 3
        %vm422 = vcmp.lt.s32.totalorder %v421, 2
        %vm423 = vcmp.eq.s32.totalorder %v421, 0
        %v424 = vxor.u32 %v418, 2147483648
        %v425 = vsel %vm423, %v410, %v424
        %vm426 = vcmp.eq.s32.totalorder %v421, 2
        %v427 = vxor.u32 %v410, 2147483648
        %v428 = vsel %vm426, %v427, %v418
        %v429 = vsel %vm422, %v425, %v428
        %v430 = vsel %vm419, nan, %v429
        %431 = vst [vmem:[%s212] sm:$0xff] %v430
        %s432 = sand.u32 %s131, 1
        %s433 = scalar_lea.sflag [#allocation3], %s432
        %s434 = sand.u32 %s131, 1
        %s435 = smul.addr %s434, 8
        %s436 = scalar_lea.vmem [#allocation2], %s435
        // Predicated region
        $region37: #{tpu_custom_call.1} parent=35 // pred_check
          %p437 = pneg %p141
        $region38: #{tpu_custom_call.1} parent=35 // pred_check_branch
          %439 = sbr.rel (%p437) target = $region40
        $region39: #{tpu_custom_call.1} parent=35 // pred_region
          %441 = vsyncadd %s433, 0
          %s442 = smul.addr %s22, 2
          %s443 = sadd.s32 %s23, %s442
          %s444 = smul.addr %s443, 8
          %s445 = scalar_lea.hbm %s4, %s444
          %s447 = sshll.u32 %s436, 4
          %s448 = int_to_ptr.vmem [resolvable:$true] %s447
          %s449 = sshll.u32 %s445, 4
          %s450 = int_to_ptr.hbm [resolvable:$true] %s449
          %452 = dma.vmem_to_hbm [thread:$0]  %s448, 128, %s450, %s433
        $region40: #{tpu_custom_call.1} parent=35 // pred_fallthru
          _
      $region36: #{tpu_custom_call.1} parent=5 // pred_fallthru
        _
      %p453 = scmp.le.s32.totalorder 2, %s13
      // Predicated region
      $region41: #{tpu_custom_call.1} parent=5 // pred_check
        %p454 = pneg %p453
      $region42: #{tpu_custom_call.1} parent=5 // pred_check_branch
        %456 = sbr.rel (%p454) target = $region44
      $region43: #{tpu_custom_call.1} parent=5 // pred_region
        %s457 = ssub.s32 %s13, 2
        // Predicated region
        $region45: #{tpu_custom_call.1} parent=43 // pred_check
          %p458 = pneg %p147
        $region46: #{tpu_custom_call.1} parent=43 // pred_check_branch
          %460 = sbr.rel (%p458) target = $region48
        $region47: #{tpu_custom_call.1} parent=43 // pred_region
          %s461 = sand.u32 %s132, 1
          %s462 = scalar_lea.sflag [#allocation3], %s461
          %s463 = sand.u32 %s132, 1
          %s464 = smul.addr %s463, 8
          %s465 = scalar_lea.vmem [#allocation2], %s464
          %467 = dma.done %s462, 128
        $region48: #{tpu_custom_call.1} parent=43 // pred_fallthru
          _
      $region44: #{tpu_custom_call.1} parent=5 // pred_fallthru
        _
    $region6: #{tpu_custom_call.1} parent=1 // loop_footer
      %s17 = sadd.s32 1, %s13
    $region7: #{tpu_custom_call.1} parent=1 // loop_footer_branch
      %12 = sbr.rel target = $region3
    $region8: #{tpu_custom_call.1} parent=1 // loop_exit
      _
    %468 = vsyncpa [#allocation3], 1
    %s469 = scalar_lea.sflag [#allocation3], 1
    %470 = vsyncpa %s469, 1

</llo_original>
